<compile_context>
chip_gen: v7x
topology: tpu7x:2x2x1
jax: 0.10.0
libtpu: 0.0.40
codegen_flags: <defaults>
</compile_context>

<pallas_src>
import jax
import jax.numpy as jnp
from jax.experimental import pallas as pl
from jax.experimental.pallas import tpu as pltpu

# nn.LeakyReLU(True): True parsed as negative_slope == 1.0 -> identity activation.
NEG_SLOPE = 1.0
LANE = 128


def _round_up(x, m):
    return ((x + m - 1) // m) * m


def _vmem_budget_bytes():
    """~85% of this chip's physical VMEM (headroom for Mosaic internal scratch / sems)."""
    try:
        phys = int(pltpu.get_tpu_info().vmem_capacity_bytes)
    except Exception:
        phys = 64 * 2 ** 20  # conservative default (v7x per-TC)
    return int(phys * 0.85)


def _pick_tiles(n_128, d_model_p, d_ff_p, itemsize, out_itemsize, budget):
    """Pick (bm, tk) so all tiles fit `budget`; prefer big row tiles and >=2 row-grid steps
    (so the 'parallel' row axis can shard across both TensorCores on v7x)."""

    def need(bm, tk):
        return (2 * bm * d_model_p * itemsize          # x tile, double-buffered
                + 2 * bm * d_model_p * out_itemsize    # out tile, double-buffered
                + 2 * d_model_p * tk * itemsize        # W1 k-tile, double-buffered
                + 2 * tk * d_model_p * itemsize        # W2 k-tile, double-buffered
                + 2 * (tk + d_model_p) * 4             # b1 / b2 (f32)
                + bm * d_model_p * 4)                  # f32 accumulator scratch

    bm_divs = [b for b in (512, 256, 128) if n_128 % b == 0]          # always contains 128
    multi = [b for b in bm_divs if n_128 // b >= 2]                   # >=2 row steps
    tk_divs = [t for t in (2048, 1024, 512, 256, 128) if d_ff_p % t == 0]  # always has 128

    for bm in (multi or bm_divs):
        for tk in tk_divs:
            if need(bm, tk) <= budget:
                return bm, tk, need(bm, tk)
    bm, tk = bm_divs[-1], tk_divs[-1]
    return bm, tk, need(bm, tk)


def pff_kernel(x_ref, w1_ref, b1_ref, w2_ref, b2_ref, o_ref, acc_ref):
    # x_ref:  (bm, d_model_p)    w1_ref: (d_model_p, tk)   b1_ref: (1, tk)        [f32]
    # w2_ref: (tk, d_model_p)    b2_ref: (1, d_model_p)    [f32]
    # o_ref:  (bm, d_model_p)    acc_ref: (bm, d_model_p)  f32 scratch accumulator
    k = pl.program_id(1)

    @pl.when(k == 0)
    def _():
        acc_ref[...] = jnp.zeros_like(acc_ref)

    # h_k = x @ W1[:, k-tile] + b1[k-tile]   (f32 accumulation on the MXU)
    h = jnp.dot(x_ref[...], w1_ref[...], preferred_element_type=jnp.float32)
    h = h + b1_ref[...]
    # LeakyReLU(negative_slope=1.0) == identity -> elided (exact).  Dropout: eval-mode no-op.
    acc_ref[...] += jnp.dot(h.astype(w2_ref.dtype), w2_ref[...],
                            preferred_element_type=jnp.float32)

    @pl.when(k == pl.num_programs(1) - 1)
    def _():
        o_ref[...] = (acc_ref[...] + b2_ref[...]).astype(o_ref.dtype)


def prepare_pff_params(w1, b1, w2, b2, *, compute_dtype=jnp.bfloat16):
    """Pad/cast the Linear parameters once (hoisted out of the per-call hot path).

    w1: (d_model, d_ff), w2: (d_ff, d_model) in (in, out) layout — equivalent to PyTorch's
    x @ W.T + b with its (out, in) weights.  Zero padding keeps the math exact."""
    d_model, d_ff = w1.shape
    d_model_p = _round_up(d_model, LANE)
    d_ff_p = _round_up(d_ff, LANE)
    compute_dtype = jnp.dtype(compute_dtype)

    w1_p = jnp.zeros((d_model_p, d_ff_p), compute_dtype).at[:d_model, :d_ff].set(
        w1.astype(compute_dtype))
    w2_p = jnp.zeros((d_ff_p, d_model_p), compute_dtype).at[:d_ff, :d_model].set(
        w2.astype(compute_dtype))
    b1_p = jnp.zeros((1, d_ff_p), jnp.float32).at[0, :d_ff].set(b1.astype(jnp.float32))
    b2_p = jnp.zeros((1, d_model_p), jnp.float32).at[0, :d_model].set(b2.astype(jnp.float32))

    return dict(w1=w1_p, b1=b1_p, w2=w2_p, b2=b2_p,
                d_model=d_model, d_ff=d_ff, compute_dtype=compute_dtype)


def positionwise_feed_forward(x, params):
    """x: (..., d_model). params: output of prepare_pff_params. Returns x's shape/dtype."""
    d_model = params["d_model"]
    compute_dtype = params["compute_dtype"]
    w1_p, b1_p, w2_p, b2_p = params["w1"], params["b1"], params["w2"], params["b2"]
    d_model_p, d_ff_p = w1_p.shape

    out_dtype = x.dtype
    orig_shape = x.shape
    x2 = x.reshape(-1, d_model)
    n = x2.shape[0]
    n_p = _round_up(n, LANE)           # pad rows only to a sublane/lane tile, not to bm

    itemsize = jnp.dtype(compute_dtype).itemsize
    out_itemsize = jnp.dtype(out_dtype).itemsize

    budget = _vmem_budget_bytes()
    bm, tk, vmem_need = _pick_tiles(n_p, d_model_p, d_ff_p, itemsize, out_itemsize,
                                    int(budget * 0.9))
    vmem_limit = int(min(budget, max(1.5 * vmem_need, 16 * 2 ** 20)))

    # Activation pad/cast: skipped entirely when shapes are already tile-aligned.
    need_pad = (n != n_p) or (d_model != d_model_p)
    if need_pad:
        x_p = jnp.zeros((n_p, d_model_p), compute_dtype).at[:n, :d_model].set(
            x2.astype(compute_dtype))
    else:
        x_p = x2.astype(compute_dtype)

    grid = (n_p // bm, d_ff_p // tk)

    # Advisory cost estimate: W1/W2 are re-streamed once per row tile.
    cost = pl.CostEstimate(
        flops=2 * 2 * n_p * d_model_p * d_ff_p,
        transcendentals=0,
        bytes_accessed=int(
            n_p * d_model_p * itemsize
            + (n_p // bm) * 2 * d_model_p * d_ff_p * itemsize
            + (d_ff_p + d_model_p) * 4
            + n_p * d_model_p * out_itemsize))

    out_p = pl.pallas_call(
        pff_kernel,
        out_shape=jax.ShapeDtypeStruct((n_p, d_model_p), out_dtype),
        grid_spec=pltpu.PrefetchScalarGridSpec(
            num_scalar_prefetch=0,
            grid=grid,
            in_specs=[
                pl.BlockSpec((bm, d_model_p), lambda i, k: (i, 0)),    # x row tile
                pl.BlockSpec((d_model_p, tk), lambda i, k: (0, k)),    # W1 k-tile (streamed)
                pl.BlockSpec((1, tk), lambda i, k: (0, k)),            # b1 k-tile (f32)
                pl.BlockSpec((tk, d_model_p), lambda i, k: (k, 0)),    # W2 k-tile (streamed)
                pl.BlockSpec((1, d_model_p), lambda i, k: (0, 0)),     # b2 (invariant, f32)
            ],
            out_specs=pl.BlockSpec((bm, d_model_p), lambda i, k: (i, 0)),
            scratch_shapes=[pltpu.VMEM((bm, d_model_p), jnp.float32)],
        ),
        compiler_params=pltpu.CompilerParams(
            dimension_semantics=("parallel", "arbitrary"),
            vmem_limit_bytes=vmem_limit),
        cost_estimate=cost,
    )(x_p, w1_p, b1_p, w2_p, b2_p)

    out = out_p[:n, :d_model] if need_pad else out_p
    return out.astype(out_dtype).reshape(orig_shape)


def positionwise_feed_forward_raw(x, w1, b1, w2, b2, *, compute_dtype=jnp.bfloat16):
    """Convenience path: pad/cast weights per call (prefer prepare_pff_params + the
    two-argument entry point so the padding happens once at parameter setup)."""
    return positionwise_feed_forward(
        x, prepare_pff_params(w1, b1, w2, b2, compute_dtype=compute_dtype))


def reference(x, w1, b1, w2, b2):
    h = x @ w1 + b1
    h = jnp.where(h >= 0, h, NEG_SLOPE * h)   # identity (slope 1.0), kept for documentation
    return h @ w2 + b2


if __name__ == "__main__":
    batch, seq, d_model, d_ff = 2, 8, 32, 64

    key = jax.random.PRNGKey(0)
    kx, kw1, kb1, kw2, kb2 = jax.random.split(key, 5)

    x = jax.random.normal(kx, (batch, seq, d_model), dtype=jnp.float32)
    # Deterministic "Linear" parameters, stored (in, out) for the kernel.
    w1 = jax.random.normal(kw1, (d_model, d_ff), dtype=jnp.float32) * (1.0 / d_model ** 0.5)
    b1 = jax.random.normal(kb1, (d_ff,), dtype=jnp.float32) * 0.01
    w2 = jax.random.normal(kw2, (d_ff, d_model), dtype=jnp.float32) * (1.0 / d_ff ** 0.5)
    b2 = jax.random.normal(kb2, (d_model,), dtype=jnp.float32) * 0.01

    ref = reference(x, w1, b1, w2, b2)

    # f32-operand path (opt-in): strict check.
    out_f32 = positionwise_feed_forward_raw(x, w1, b1, w2, b2, compute_dtype=jnp.float32)
    out_f32 = jax.block_until_ready(out_f32)
    assert out_f32.shape == x.shape and out_f32.dtype == x.dtype
    assert jnp.allclose(out_f32, ref, atol=1e-4, rtol=1e-4), "f32 mismatch vs reference"

    # Default bf16-operand / f32-accumulation path with params prepared once (hot path).
    params = prepare_pff_params(w1, b1, w2, b2)   # bf16 by default
    out_bf16 = positionwise_feed_forward(x, params)
    out_bf16 = jax.block_until_ready(out_bf16)
    assert out_bf16.shape == x.shape and out_bf16.dtype == x.dtype
    assert jnp.allclose(out_bf16, ref, atol=1e-1, rtol=1e-1), "bf16 mismatch vs reference"

    print("KERNEL_OK")
</pallas_src>

<mosaic_0001>
module attributes {stable_mosaic.version = 11 : i64} {
  func.func @pff_kernel(%arg0: i32, %arg1: i32, %arg2: memref<128x128xf32, #tpu.memory_space<vmem>>, %arg3: memref<128x128xf32, #tpu.memory_space<vmem>>, %arg4: memref<1x128xf32, #tpu.memory_space<vmem>>, %arg5: memref<128x128xf32, #tpu.memory_space<vmem>>, %arg6: memref<1x128xf32, #tpu.memory_space<vmem>>, %arg7: memref<128x128xf32, #tpu.memory_space<vmem>>, %arg8: memref<128x128xf32, #tpu.memory_space<vmem>>) attributes {dimension_semantics = [#tpu.dimension_semantics<parallel>, #tpu.dimension_semantics<arbitrary>], iteration_bounds = array<i64: 1, 1>, scalar_prefetch = 0 : i64, scratch_operands = 1 : i64, tpu.core_type = #tpu.core_type<tc>, window_params = [{transform_indices = @transform_0, window_bounds = array<i64: 128, 128>}, {transform_indices = @transform_1, window_bounds = array<i64: 128, 128>}, {transform_indices = @transform_2, window_bounds = array<i64: 1, 128>}, {transform_indices = @transform_3, window_bounds = array<i64: 128, 128>}, {pipeline_mode = #tpu.pipeline_mode<synchronous>, transform_indices = @transform_4, window_bounds = array<i64: 1, 128>}, {transform_indices = @transform_5, window_bounds = array<i64: 128, 128>}]} {
    %c0_i32 = arith.constant 0 : i32
    %0 = arith.cmpi eq, %arg1, %c0_i32 : i32
    %1 = arith.extui %0 : i1 to i32
    %c0_i32_0 = arith.constant 0 : i32
    %2 = arith.cmpi ne, %1, %c0_i32_0 : i32
    scf.if %2 {
      %cst_15 = arith.constant 0.000000e+00 : f32
      %17 = vector.broadcast %cst_15 : f32 to vector<128x128xf32>
      %c0_16 = arith.constant 0 : index
      %c0_17 = arith.constant 0 : index
      %18 = vector.load %arg8[%c0_16, %c0_17] : memref<128x128xf32, #tpu.memory_space<vmem>>, vector<128x128xf32>
      tpu.vector_store %arg8[%c0_16, %c0_17], %17 {strides = array<i32>} : memref<128x128xf32, #tpu.memory_space<vmem>>, vector<128x128xf32>,
    } else {
    }
    %c0 = arith.constant 0 : index
    %c0_1 = arith.constant 0 : index
    %3 = vector.load %arg2[%c0, %c0_1] : memref<128x128xf32, #tpu.memory_space<vmem>>, vector<128x128xf32>
    %c0_2 = arith.constant 0 : index
    %c0_3 = arith.constant 0 : index
    %4 = vector.load %arg3[%c0_2, %c0_3] : memref<128x128xf32, #tpu.memory_space<vmem>>, vector<128x128xf32>
    %cst = arith.constant dense<0.000000e+00> : vector<128x128xf32>
    %5 = tpu.matmul %3, %4, %cst {dimension_numbers = #tpu.dot_dimension_numbers<[1], [0], [0], [1], [0, 0, 1, 1], [], []>} : vector<128x128xf32>, vector<128x128xf32>, vector<128x128xf32> -> vector<128x128xf32>
    %c0_4 = arith.constant 0 : index
    %c0_5 = arith.constant 0 : index
    %6 = vector.load %arg4[%c0_4, %c0_5] : memref<1x128xf32, #tpu.memory_space<vmem>>, vector<1x128xf32>
    %7 = vector.broadcast %6 : vector<1x128xf32> to vector<128x128xf32>
    %8 = arith.addf %5, %7 : vector<128x128xf32>
    %c0_6 = arith.constant 0 : index
    %c0_7 = arith.constant 0 : index
    %9 = vector.load %arg8[%c0_6, %c0_7] : memref<128x128xf32, #tpu.memory_space<vmem>>, vector<128x128xf32>
    %c0_8 = arith.constant 0 : index
    %c0_9 = arith.constant 0 : index
    %10 = vector.load %arg5[%c0_8, %c0_9] : memref<128x128xf32, #tpu.memory_space<vmem>>, vector<128x128xf32>
    %cst_10 = arith.constant dense<0.000000e+00> : vector<128x128xf32>
    %11 = tpu.matmul %8, %10, %cst_10 {dimension_numbers = #tpu.dot_dimension_numbers<[1], [0], [0], [1], [0, 0, 1, 1], [], []>} : vector<128x128xf32>, vector<128x128xf32>, vector<128x128xf32> -> vector<128x128xf32>
    %12 = arith.addf %9, %11 : vector<128x128xf32>
    %c0_11 = arith.constant 0 : index
    %c0_12 = arith.constant 0 : index
    %13 = vector.load %arg8[%c0_11, %c0_12] : memref<128x128xf32, #tpu.memory_space<vmem>>, vector<128x128xf32>
    tpu.vector_store %arg8[%c0_11, %c0_12], %12 {strides = array<i32>} : memref<128x128xf32, #tpu.memory_space<vmem>>, vector<128x128xf32>,
    %c0_i32_13 = arith.constant 0 : i32
    %14 = arith.cmpi eq, %arg1, %c0_i32_13 : i32
    %15 = arith.extui %14 : i1 to i32
    %c0_i32_14 = arith.constant 0 : i32
    %16 = arith.cmpi ne, %15, %c0_i32_14 : i32
    scf.if %16 {
      %c0_15 = arith.constant 0 : index
      %c0_16 = arith.constant 0 : index
      %17 = vector.load %arg8[%c0_15, %c0_16] : memref<128x128xf32, #tpu.memory_space<vmem>>, vector<128x128xf32>
      %c0_17 = arith.constant 0 : index
      %c0_18 = arith.constant 0 : index
      %18 = vector.load %arg6[%c0_17, %c0_18] : memref<1x128xf32, #tpu.memory_space<vmem>>, vector<1x128xf32>
      %19 = vector.broadcast %18 : vector<1x128xf32> to vector<128x128xf32>
      %20 = arith.addf %17, %19 : vector<128x128xf32>
      %c0_19 = arith.constant 0 : index
      %c0_20 = arith.constant 0 : index
      %21 = vector.load %arg7[%c0_19, %c0_20] : memref<128x128xf32, #tpu.memory_space<vmem>>, vector<128x128xf32>
      tpu.vector_store %arg7[%c0_19, %c0_20], %20 {strides = array<i32>} : memref<128x128xf32, #tpu.memory_space<vmem>>, vector<128x128xf32>,
    } else {
    }
    return
  }
  func.func @transform_0(%arg0: i32, %arg1: i32) -> (i32, i32) {
    %c0_i32 = arith.constant 0 : i32
    %c0_i32_0 = arith.constant 0 : i32
    return %arg0, %c0_i32 : i32, i32
  }
  func.func @transform_1(%arg0: i32, %arg1: i32) -> (i32, i32) {
    %c0_i32 = arith.constant 0 : i32
    %c0_i32_0 = arith.constant 0 : i32
    return %c0_i32, %arg1 : i32, i32
  }
  func.func @transform_2(%arg0: i32, %arg1: i32) -> (i32, i32) {
    %c0_i32 = arith.constant 0 : i32
    %c0_i32_0 = arith.constant 0 : i32
    return %c0_i32, %arg1 : i32, i32
  }
  func.func @transform_3(%arg0: i32, %arg1: i32) -> (i32, i32) {
    %c0_i32 = arith.constant 0 : i32
    %c0_i32_0 = arith.constant 0 : i32
    return %arg1, %c0_i32 : i32, i32
  }
  func.func @transform_4(%arg0: i32, %arg1: i32) -> (i32, i32) {
    %c0_i32 = arith.constant 0 : i32
    %c0_i32_0 = arith.constant 0 : i32
    %c0_i32_1 = arith.constant 0 : i32
    return %c0_i32, %c0_i32_0 : i32, i32
  }
  func.func @transform_5(%arg0: i32, %arg1: i32) -> (i32, i32) {
    %c0_i32 = arith.constant 0 : i32
    %c0_i32_0 = arith.constant 0 : i32
    return %arg0, %c0_i32 : i32, i32
  }
}

</mosaic_0001>

<llo_original>
// kernel: tpu_custom_call.1
$region0: #{tpu_custom_call.1}
  #allocation0 [shape = 'u32[]', space=smem, size = 0x4, offset = 0x4, fixed_abs, tag = 'smem constant byte address 0x4 - core index']
  #allocation1 [shape = 'u32[144,128]{1,0:T(1,128)}', space=vmem, size = 0x12000, scoped, tag = 'internal scratch']
  #allocation2 [shape = 'f32[128,128]{1,0:T(8,128)}', space=vmem, size = 0x10000, scoped, tag = 'scratch operand']
  %s0 = inlined_call_operand.hbm [shape: f32[128,128], index: 0, kind: input, shape index: {}]
  %s1 = inlined_call_operand.hbm [shape: f32[128,128], index: 1, kind: input, shape index: {}]
  %s2 = inlined_call_operand.vmem [shape: f32[1,128], index: 2, kind: input, shape index: {}]
  %s3 = inlined_call_operand.hbm [shape: f32[128,128], index: 3, kind: input, shape index: {}]
  %s4 = inlined_call_operand.vmem [shape: f32[1,128], index: 4, kind: input, shape index: {}]
  %s5 = inlined_call_operand.hbm [shape: f32[128,128], index: 5, kind: output, shape index: {}]
  %s6 = sld [smem:[#allocation0]]
  $region50: #{tpu_custom_call.1} parent=0
    _
  %s8 = ssub.s32 1, %s6
  %s9 = scalar_select 0, %s8, %s6
  $region1: #{tpu_custom_call.1} parent=0
    #allocation3 [shape = 'u8[65536]{0}', space=vmem, size = 0x10000, scoped, tag = 'input window, operand 0, single buffered']
    #allocation4 [shape = 's32[1]{0}', space=sflag, size = 0x4, scoped, tag = 'scoped memory for tpu_custom_call.1']
    #allocation5 [shape = 's32[1]{0}', space=sflag, size = 0x4, scoped, tag = 'scoped memory for tpu_custom_call.1']
    #allocation6 [shape = 'u8[65536]{0}', space=vmem, size = 0x10000, scoped, tag = 'input window, operand 1, single buffered']
    #allocation7 [shape = 's32[1]{0}', space=sflag, size = 0x4, scoped, tag = 'scoped memory for tpu_custom_call.1']
    #allocation8 [shape = 'u8[65536]{0}', space=vmem, size = 0x10000, scoped, tag = 'input window, operand 3, single buffered']
    #allocation9 [shape = 'u8[65536]{0}', space=vmem, size = 0x10000, scoped, tag = 'output window, operand 0, single buffered']
    %10 = vsyncpa [#allocation4], 0
    %11 = vsyncpa [#allocation7], 0
    %12 = vsyncpa [#allocation5], 0
    // Predicated region
    $region2: #{tpu_custom_call.1} parent=1 // pred_check
      _
    $region3: #{tpu_custom_call.1} parent=1 // pred_check_branch
      %14 = sbr.rel (0) target = $region5
    $region4: #{tpu_custom_call.1} parent=1 // pred_region
      %s16 = ssub.s32 2048, 2048
      %17 = vsyncadd [#allocation4], %s16
      %s18 = sshll.u32 [#allocation3], 4
      %s19 = int_to_ptr.vmem [resolvable:$true] %s18
      %24 = dma.hbm_to_vmem [thread:$0]  %s0, 2048, %s19, [#allocation4], 128, 128, 8
    $region5: #{tpu_custom_call.1} parent=1 // pred_fallthru
      _
    // Predicated region
    $region6: #{tpu_custom_call.1} parent=1 // pred_check
      _
    $region7: #{tpu_custom_call.1} parent=1 // pred_check_branch
      %26 = sbr.rel (0) target = $region9
    $region8: #{tpu_custom_call.1} parent=1 // pred_region
      %s28 = ssub.s32 2048, 2048
      %29 = vsyncadd [#allocation7], %s28
      %s30 = sshll.u32 [#allocation6], 4
      %s31 = int_to_ptr.vmem [resolvable:$true] %s30
      %36 = dma.hbm_to_vmem [thread:$0]  %s1, 2048, %s31, [#allocation7], 128, 128, 8
    $region9: #{tpu_custom_call.1} parent=1 // pred_fallthru
      _
    // Predicated region
    $region10: #{tpu_custom_call.1} parent=1 // pred_check
      _
    $region11: #{tpu_custom_call.1} parent=1 // pred_check_branch
      %38 = sbr.rel (0) target = $region13
    $region12: #{tpu_custom_call.1} parent=1 // pred_region
      _
    $region13: #{tpu_custom_call.1} parent=1 // pred_fallthru
      _
    // Predicated region
    $region14: #{tpu_custom_call.1} parent=1 // pred_check
      _
    $region15: #{tpu_custom_call.1} parent=1 // pred_check_branch
      %40 = sbr.rel (0) target = $region17
    $region16: #{tpu_custom_call.1} parent=1 // pred_region
      %s42 = ssub.s32 2048, 2048
      %43 = vsyncadd [#allocation7], %s42
      %s44 = sshll.u32 [#allocation8], 4
      %s45 = int_to_ptr.vmem [resolvable:$true] %s44
      %50 = dma.hbm_to_vmem [thread:$0]  %s3, 2048, %s45, [#allocation7], 128, 128, 8
    $region17: #{tpu_custom_call.1} parent=1 // pred_fallthru
      _
    // Predicated region
    $region18: #{tpu_custom_call.1} parent=1 // pred_check
      _
    $region19: #{tpu_custom_call.1} parent=1 // pred_check_branch
      %52 = sbr.rel (0) target = $region21
    $region20: #{tpu_custom_call.1} parent=1 // pred_region
      _
    $region21: #{tpu_custom_call.1} parent=1 // pred_fallthru
      _
    // Predicated region
    $region22: #{tpu_custom_call.1} parent=1 // pred_check
      _
    $region23: #{tpu_custom_call.1} parent=1 // pred_check_branch
      %54 = sbr.rel (0) target = $region25
    $region24: #{tpu_custom_call.1} parent=1 // pred_region
      %55 = dma.done [#allocation4], 2048
    $region25: #{tpu_custom_call.1} parent=1 // pred_fallthru
      _
    // Predicated region
    $region26: #{tpu_custom_call.1} parent=1 // pred_check
      _
    $region27: #{tpu_custom_call.1} parent=1 // pred_check_branch
      %57 = sbr.rel (0) target = $region29
    $region28: #{tpu_custom_call.1} parent=1 // pred_region
      %58 = dma.done [#allocation7], 2048
    $region29: #{tpu_custom_call.1} parent=1 // pred_fallthru
      _
    // Predicated region
    $region30: #{tpu_custom_call.1} parent=1 // pred_check
      _
    $region31: #{tpu_custom_call.1} parent=1 // pred_check_branch
      %60 = sbr.rel (0) target = $region33
    $region32: #{tpu_custom_call.1} parent=1 // pred_region
      %61 = dma.done [#allocation7], 2048
    $region33: #{tpu_custom_call.1} parent=1 // pred_fallthru
      _
    %p62 = scmp.eq.s32.totalorder 0, 0
    // Predicated region
    $region34: #{tpu_custom_call.1} parent=1 // pred_check
      %p63 = pneg %p62
    $region35: #{tpu_custom_call.1} parent=1 // pred_check_branch
      %65 = sbr.rel (%p63) target = $region37
    $region36: #{tpu_custom_call.1} parent=1 // pred_region
      %66 = vst [vmem:[#allocation2] sm:$0xff] 0.0
      %67 = vst [vmem:[#allocation2 + $0x8] sm:$0xff] 0.0
      %68 = vst [vmem:[#allocation2 + $0x10] sm:$0xff] 0.0
      %69 = vst [vmem:[#allocation2 + $0x18] sm:$0xff] 0.0
      %70 = vst [vmem:[#allocation2 + $0x20] sm:$0xff] 0.0
      %71 = vst [vmem:[#allocation2 + $0x28] sm:$0xff] 0.0
      %72 = vst [vmem:[#allocation2 + $0x30] sm:$0xff] 0.0
      %73 = vst [vmem:[#allocation2 + $0x38] sm:$0xff] 0.0
      %74 = vst [vmem:[#allocation2 + $0x40] sm:$0xff] 0.0
      %75 = vst [vmem:[#allocation2 + $0x48] sm:$0xff] 0.0
      %76 = vst [vmem:[#allocation2 + $0x50] sm:$0xff] 0.0
      %77 = vst [vmem:[#allocation2 + $0x58] sm:$0xff] 0.0
      %78 = vst [vmem:[#allocation2 + $0x60] sm:$0xff] 0.0
      %79 = vst [vmem:[#allocation2 + $0x68] sm:$0xff] 0.0
      %80 = vst [vmem:[#allocation2 + $0x70] sm:$0xff] 0.0
      %81 = vst [vmem:[#allocation2 + $0x78] sm:$0xff] 0.0
    $region37: #{tpu_custom_call.1} parent=1 // pred_fallthru
      _
    %v82 = vld [vmem:[#allocation3] sm:$0xff]
    %v83 = vld [vmem:[#allocation3 + $0x8] sm:$0xff]
    %v84 = vld [vmem:[#allocation3 + $0x10] sm:$0xff]
    %v85 = vld [vmem:[#allocation3 + $0x18] sm:$0xff]
    %v86 = vld [vmem:[#allocation3 + $0x20] sm:$0xff]
    %v87 = vld [vmem:[#allocation3 + $0x28] sm:$0xff]
    %v88 = vld [vmem:[#allocation3 + $0x30] sm:$0xff]
    %v89 = vld [vmem:[#allocation3 + $0x38] sm:$0xff]
    %v90 = vld [vmem:[#allocation3 + $0x40] sm:$0xff]
    %v91 = vld [vmem:[#allocation3 + $0x48] sm:$0xff]
    %v92 = vld [vmem:[#allocation3 + $0x50] sm:$0xff]
    %v93 = vld [vmem:[#allocation3 + $0x58] sm:$0xff]
    %v94 = vld [vmem:[#allocation3 + $0x60] sm:$0xff]
    %v95 = vld [vmem:[#allocation3 + $0x68] sm:$0xff]
    %v96 = vld [vmem:[#allocation3 + $0x70] sm:$0xff]
    %v97 = vld [vmem:[#allocation3 + $0x78] sm:$0xff]
    %v98 = vld [vmem:[#allocation6] sm:$0xff]
    %v99 = vld [vmem:[#allocation6 + $0x8] sm:$0xff]
    %v100 = vld [vmem:[#allocation6 + $0x10] sm:$0xff]
    %v101 = vld [vmem:[#allocation6 + $0x18] sm:$0xff]
    %v102 = vld [vmem:[#allocation6 + $0x20] sm:$0xff]
    %v103 = vld [vmem:[#allocation6 + $0x28] sm:$0xff]
    %v104 = vld [vmem:[#allocation6 + $0x30] sm:$0xff]
    %v105 = vld [vmem:[#allocation6 + $0x38] sm:$0xff]
    %v106 = vld [vmem:[#allocation6 + $0x40] sm:$0xff]
    %v107 = vld [vmem:[#allocation6 + $0x48] sm:$0xff]
    %v108 = vld [vmem:[#allocation6 + $0x50] sm:$0xff]
    %v109 = vld [vmem:[#allocation6 + $0x58] sm:$0xff]
    %v110 = vld [vmem:[#allocation6 + $0x60] sm:$0xff]
    %v111 = vld [vmem:[#allocation6 + $0x68] sm:$0xff]
    %v112 = vld [vmem:[#allocation6 + $0x70] sm:$0xff]
    %v113 = vld [vmem:[#allocation6 + $0x78] sm:$0xff]
    %v114 = vld [vmem:[%s2] sm:$0x1]
    %v116 = vlaneseq
    %v117 = vshrl.u32 %v116, 7
    %v118 = vsub.s32 0, %v117
    %v119 = vrot.slane %v114, %v118
    %121 = vmatprep.subr.mxu0 0.0
    %122 = vmatpush1.msra.mxu0 %v98
    %123 = vmatprep.subr.mxu0 0.0
    %124 = vmatpush1.msra.mxu0 %v99
    %125 = vmatprep.subr.mxu0 0.0
    %126 = vmatpush1.msra.mxu0 %v100
    %127 = vmatprep.subr.mxu0 0.0
    %128 = vmatpush1.msra.mxu0 %v101
    %129 = vmatprep.subr.mxu0 0.0
    %130 = vmatpush1.msra.mxu0 %v102
    %131 = vmatprep.subr.mxu0 0.0
    %132 = vmatpush1.msra.mxu0 %v103
    %133 = vmatprep.subr.mxu0 0.0
    %134 = vmatpush1.msra.mxu0 %v104
    %135 = vmatprep.subr.mxu0 0.0
    %136 = vmatpush1.msra.mxu0 %v105
    %137 = vmatprep.subr.mxu0 0.0
    %138 = vmatpush1.msra.mxu0 %v106
    %139 = vmatprep.subr.mxu0 0.0
    %140 = vmatpush1.msra.mxu0 %v107
    %141 = vmatprep.subr.mxu0 0.0
    %142 = vmatpush1.msra.mxu0 %v108
    %143 = vmatprep.subr.mxu0 0.0
    %144 = vmatpush1.msra.mxu0 %v109
    %145 = vmatprep.subr.mxu0 0.0
    %146 = vmatpush1.msra.mxu0 %v110
    %147 = vmatprep.subr.mxu0 0.0
    %148 = vmatpush1.msra.mxu0 %v111
    %149 = vmatprep.subr.mxu0 0.0
    %150 = vmatpush1.msra.mxu0 %v112
    %151 = vmatprep.subr.mxu0 0.0
    %152 = vmatpush1.msra.mxu0 %v113
    %153 = vmatprep.subr.mxu0 0.0
    %154 = vmatpush1.msra.mxu0 0.0
    %155 = vmatprep.subr.mxu0 0.0
    %156 = vmatpush1.msra.mxu0 0.0
    %157 = vmatprep.subr.mxu0 0.0
    %158 = vmatpush1.msra.mxu0 0.0
    %159 = vmatprep.subr.mxu0 0.0
    %160 = vmatpush1.msra.mxu0 0.0
    %161 = vmatprep.subr.mxu0 0.0
    %162 = vmatpush1.msra.mxu0 0.0
    %163 = vmatprep.subr.mxu0 0.0
    %164 = vmatpush1.msra.mxu0 0.0
    %165 = vmatprep.subr.mxu0 0.0
    %166 = vmatpush1.msra.mxu0 0.0
    %167 = vmatprep.subr.mxu0 0.0
    %168 = vmatpush1.msra.mxu0 0.0
    %169 = vmatprep.subr.mxu0 0.0
    %170 = vmatpush1.msra.mxu0 0.0
    %171 = vmatprep.subr.mxu0 0.0
    %172 = vmatpush1.msra.mxu0 0.0
    %173 = vmatprep.subr.mxu0 0.0
    %174 = vmatpush1.msra.mxu0 0.0
    %175 = vmatprep.subr.mxu0 0.0
    %176 = vmatpush1.msra.mxu0 0.0
    %177 = vmatprep.subr.mxu0 0.0
    %178 = vmatpush1.msra.mxu0 0.0
    %179 = vmatprep.subr.mxu0 0.0
    %180 = vmatpush1.msra.mxu0 0.0
    %181 = vmatprep.subr.mxu0 0.0
    %182 = vmatpush1.msra.mxu0 0.0
    %183 = vmatprep.subr.mxu0 0.0
    %184 = vmatpush1.msra.mxu0 0.0
    %185 = vmatprep.mubr.f32.mxu0 0.0
    %186 = vmatmul.mubr.f32.gmra.mrb[0].mxu0 %v82
    %v187 = vpop.f32.mrb[0].mxu0
    %v188 = vadd.f32 %v119, %v187
    %v189 = vpop.f32.mrb[0].mxu0
    %190 = vmatprep.mubr.f32.mxu0 0.0
    %191 = vmatmul.mubr.f32.gmra.mrb[0].mxu0 %v83
    %v192 = vpop.f32.mrb[0].mxu0
    %v193 = vadd.f32 %v119, %v192
    %v194 = vpop.f32.mrb[0].mxu0
    %195 = vmatprep.mubr.f32.mxu0 0.0
    %196 = vmatmul.mubr.f32.gmra.mrb[0].mxu0 %v84
    %v197 = vpop.f32.mrb[0].mxu0
    %v198 = vadd.f32 %v119, %v197
    %v199 = vpop.f32.mrb[0].mxu0
    %200 = vmatprep.mubr.f32.mxu0 0.0
    %201 = vmatmul.mubr.f32.gmra.mrb[0].mxu0 %v85
    %v202 = vpop.f32.mrb[0].mxu0
    %v203 = vadd.f32 %v119, %v202
    %v204 = vpop.f32.mrb[0].mxu0
    %205 = vmatprep.mubr.f32.mxu0 0.0
    %206 = vmatmul.mubr.f32.gmra.mrb[0].mxu0 %v86
    %v207 = vpop.f32.mrb[0].mxu0
    %v208 = vadd.f32 %v119, %v207
    %v209 = vpop.f32.mrb[0].mxu0
    %210 = vmatprep.mubr.f32.mxu0 0.0
    %211 = vmatmul.mubr.f32.gmra.mrb[0].mxu0 %v87
    %v212 = vpop.f32.mrb[0].mxu0
    %v213 = vadd.f32 %v119, %v212
    %v214 = vpop.f32.mrb[0].mxu0
    %215 = vmatprep.mubr.f32.mxu0 0.0
    %216 = vmatmul.mubr.f32.gmra.mrb[0].mxu0 %v88
    %v217 = vpop.f32.mrb[0].mxu0
    %v218 = vadd.f32 %v119, %v217
    %v219 = vpop.f32.mrb[0].mxu0
    %220 = vmatprep.mubr.f32.mxu0 0.0
    %221 = vmatmul.mubr.f32.gmra.mrb[0].mxu0 %v89
    %v222 = vpop.f32.mrb[0].mxu0
    %v223 = vadd.f32 %v119, %v222
    %v224 = vpop.f32.mrb[0].mxu0
    %225 = vmatprep.mubr.f32.mxu0 0.0
    %226 = vmatmul.mubr.f32.gmra.mrb[0].mxu0 %v90
    %v227 = vpop.f32.mrb[0].mxu0
    %v228 = vadd.f32 %v119, %v227
    %v229 = vpop.f32.mrb[0].mxu0
    %230 = vmatprep.mubr.f32.mxu0 0.0
    %231 = vmatmul.mubr.f32.gmra.mrb[0].mxu0 %v91
    %v232 = vpop.f32.mrb[0].mxu0
    %v233 = vadd.f32 %v119, %v232
    %v234 = vpop.f32.mrb[0].mxu0
    %235 = vmatprep.mubr.f32.mxu0 0.0
    %236 = vmatmul.mubr.f32.gmra.mrb[0].mxu0 %v92
    %v237 = vpop.f32.mrb[0].mxu0
    %v238 = vadd.f32 %v119, %v237
    %v239 = vpop.f32.mrb[0].mxu0
    %240 = vmatprep.mubr.f32.mxu0 0.0
    %241 = vmatmul.mubr.f32.gmra.mrb[0].mxu0 %v93
    %v242 = vpop.f32.mrb[0].mxu0
    %v243 = vadd.f32 %v119, %v242
    %v244 = vpop.f32.mrb[0].mxu0
    %245 = vmatprep.mubr.f32.mxu0 0.0
    %246 = vmatmul.mubr.f32.gmra.mrb[0].mxu0 %v94
    %v247 = vpop.f32.mrb[0].mxu0
    %v248 = vadd.f32 %v119, %v247
    %v249 = vpop.f32.mrb[0].mxu0
    %250 = vmatprep.mubr.f32.mxu0 0.0
    %251 = vmatmul.mubr.f32.gmra.mrb[0].mxu0 %v95
    %v252 = vpop.f32.mrb[0].mxu0
    %v253 = vadd.f32 %v119, %v252
    %v254 = vpop.f32.mrb[0].mxu0
    %255 = vmatprep.mubr.f32.mxu0 0.0
    %256 = vmatmul.mubr.f32.gmra.mrb[0].mxu0 %v96
    %v257 = vpop.f32.mrb[0].mxu0
    %v258 = vadd.f32 %v119, %v257
    %v259 = vpop.f32.mrb[0].mxu0
    %260 = vmatprep.mubr.f32.mxu0 0.0
    %261 = vmatmul.mubr.f32.gmra.mrb[0].mxu0 %v97
    %v262 = vpop.f32.mrb[0].mxu0
    %v263 = vadd.f32 %v119, %v262
    %v264 = vpop.f32.mrb[0].mxu0
    %265 = vdwg.mxu0
    %v266 = vld [vmem:[#allocation2] sm:$0xff]
    %v267 = vld [vmem:[#allocation2 + $0x8] sm:$0xff]
    %v268 = vld [vmem:[#allocation2 + $0x10] sm:$0xff]
    %v269 = vld [vmem:[#allocation2 + $0x18] sm:$0xff]
    %v270 = vld [vmem:[#allocation2 + $0x20] sm:$0xff]
    %v271 = vld [vmem:[#allocation2 + $0x28] sm:$0xff]
    %v272 = vld [vmem:[#allocation2 + $0x30] sm:$0xff]
    %v273 = vld [vmem:[#allocation2 + $0x38] sm:$0xff]
    %v274 = vld [vmem:[#allocation2 + $0x40] sm:$0xff]
    %v275 = vld [vmem:[#allocation2 + $0x48] sm:$0xff]
    %v276 = vld [vmem:[#allocation2 + $0x50] sm:$0xff]
    %v277 = vld [vmem:[#allocation2 + $0x58] sm:$0xff]
    %v278 = vld [vmem:[#allocation2 + $0x60] sm:$0xff]
    %v279 = vld [vmem:[#allocation2 + $0x68] sm:$0xff]
    %v280 = vld [vmem:[#allocation2 + $0x70] sm:$0xff]
    %v281 = vld [vmem:[#allocation2 + $0x78] sm:$0xff]
    %v282 = vld [vmem:[#allocation8] sm:$0xff]
    %v283 = vld [vmem:[#allocation8 + $0x8] sm:$0xff]
    %v284 = vld [vmem:[#allocation8 + $0x10] sm:$0xff]
    %v285 = vld [vmem:[#allocation8 + $0x18] sm:$0xff]
    %v286 = vld [vmem:[#allocation8 + $0x20] sm:$0xff]
    %v287 = vld [vmem:[#allocation8 + $0x28] sm:$0xff]
    %v288 = vld [vmem:[#allocation8 + $0x30] sm:$0xff]
    %v289 = vld [vmem:[#allocation8 + $0x38] sm:$0xff]
    %v290 = vld [vmem:[#allocation8 + $0x40] sm:$0xff]
    %v291 = vld [vmem:[#allocation8 + $0x48] sm:$0xff]
    %v292 = vld [vmem:[#allocation8 + $0x50] sm:$0xff]
    %v293 = vld [vmem:[#allocation8 + $0x58] sm:$0xff]
    %v294 = vld [vmem:[#allocation8 + $0x60] sm:$0xff]
    %v295 = vld [vmem:[#allocation8 + $0x68] sm:$0xff]
    %v296 = vld [vmem:[#allocation8 + $0x70] sm:$0xff]
    %v297 = vld [vmem:[#allocation8 + $0x78] sm:$0xff]
    %298 = vmatprep.subr.mxu0 0.0
    %299 = vmatpush1.msra.mxu0 %v282
    %300 = vmatprep.subr.mxu0 0.0
    %301 = vmatpush1.msra.mxu0 %v283
    %302 = vmatprep.subr.mxu0 0.0
    %303 = vmatpush1.msra.mxu0 %v284
    %304 = vmatprep.subr.mxu0 0.0
    %305 = vmatpush1.msra.mxu0 %v285
    %306 = vmatprep.subr.mxu0 0.0
    %307 = vmatpush1.msra.mxu0 %v286
    %308 = vmatprep.subr.mxu0 0.0
    %309 = vmatpush1.msra.mxu0 %v287
    %310 = vmatprep.subr.mxu0 0.0
    %311 = vmatpush1.msra.mxu0 %v288
    %312 = vmatprep.subr.mxu0 0.0
    %313 = vmatpush1.msra.mxu0 %v289
    %314 = vmatprep.subr.mxu0 0.0
    %315 = vmatpush1.msra.mxu0 %v290
    %316 = vmatprep.subr.mxu0 0.0
    %317 = vmatpush1.msra.mxu0 %v291
    %318 = vmatprep.subr.mxu0 0.0
    %319 = vmatpush1.msra.mxu0 %v292
    %320 = vmatprep.subr.mxu0 0.0
    %321 = vmatpush1.msra.mxu0 %v293
    %322 = vmatprep.subr.mxu0 0.0
    %323 = vmatpush1.msra.mxu0 %v294
    %324 = vmatprep.subr.mxu0 0.0
    %325 = vmatpush1.msra.mxu0 %v295
    %326 = vmatprep.subr.mxu0 0.0
    %327 = vmatpush1.msra.mxu0 %v296
    %328 = vmatprep.subr.mxu0 0.0
    %329 = vmatpush1.msra.mxu0 %v297
    %330 = vmatprep.subr.mxu0 0.0
    %331 = vmatpush1.msra.mxu0 0.0
    %332 = vmatprep.subr.mxu0 0.0
    %333 = vmatpush1.msra.mxu0 0.0
    %334 = vmatprep.subr.mxu0 0.0
    %335 = vmatpush1.msra.mxu0 0.0
    %336 = vmatprep.subr.mxu0 0.0
    %337 = vmatpush1.msra.mxu0 0.0
    %338 = vmatprep.subr.mxu0 0.0
    %339 = vmatpush1.msra.mxu0 0.0
    %340 = vmatprep.subr.mxu0 0.0
    %341 = vmatpush1.msra.mxu0 0.0
    %342 = vmatprep.subr.mxu0 0.0
    %343 = vmatpush1.msra.mxu0 0.0
    %344 = vmatprep.subr.mxu0 0.0
    %345 = vmatpush1.msra.mxu0 0.0
    %346 = vmatprep.subr.mxu0 0.0
    %347 = vmatpush1.msra.mxu0 0.0
    %348 = vmatprep.subr.mxu0 0.0
    %349 = vmatpush1.msra.mxu0 0.0
    %350 = vmatprep.subr.mxu0 0.0
    %351 = vmatpush1.msra.mxu0 0.0
    %352 = vmatprep.subr.mxu0 0.0
    %353 = vmatpush1.msra.mxu0 0.0
    %354 = vmatprep.subr.mxu0 0.0
    %355 = vmatpush1.msra.mxu0 0.0
    %356 = vmatprep.subr.mxu0 0.0
    %357 = vmatpush1.msra.mxu0 0.0
    %358 = vmatprep.subr.mxu0 0.0
    %359 = vmatpush1.msra.mxu0 0.0
    %360 = vmatprep.subr.mxu0 0.0
    %361 = vmatpush1.msra.mxu0 0.0
    %362 = vmatprep.mubr.f32.mxu0 0.0
    %363 = vmatmul.mubr.f32.gmra.mrb[0].mxu0 %v188
    %v364 = vpop.f32.mrb[0].mxu0
    %v365 = vadd.f32 0.0, %v364
    %v366 = vpop.f32.mrb[0].mxu0
    %367 = vmatprep.mubr.f32.mxu0 0.0
    %368 = vmatmul.mubr.f32.gmra.mrb[0].mxu0 %v193
    %v369 = vpop.f32.mrb[0].mxu0
    %v370 = vadd.f32 0.0, %v369
    %v371 = vpop.f32.mrb[0].mxu0
    %372 = vmatprep.mubr.f32.mxu0 0.0
    %373 = vmatmul.mubr.f32.gmra.mrb[0].mxu0 %v198
    %v374 = vpop.f32.mrb[0].mxu0
    %v375 = vadd.f32 0.0, %v374
    %v376 = vpop.f32.mrb[0].mxu0
    %377 = vmatprep.mubr.f32.mxu0 0.0
    %378 = vmatmul.mubr.f32.gmra.mrb[0].mxu0 %v203
    %v379 = vpop.f32.mrb[0].mxu0
    %v380 = vadd.f32 0.0, %v379
    %v381 = vpop.f32.mrb[0].mxu0
    %382 = vmatprep.mubr.f32.mxu0 0.0
    %383 = vmatmul.mubr.f32.gmra.mrb[0].mxu0 %v208
    %v384 = vpop.f32.mrb[0].mxu0
    %v385 = vadd.f32 0.0, %v384
    %v386 = vpop.f32.mrb[0].mxu0
    %387 = vmatprep.mubr.f32.mxu0 0.0
    %388 = vmatmul.mubr.f32.gmra.mrb[0].mxu0 %v213
    %v389 = vpop.f32.mrb[0].mxu0
    %v390 = vadd.f32 0.0, %v389
    %v391 = vpop.f32.mrb[0].mxu0
    %392 = vmatprep.mubr.f32.mxu0 0.0
    %393 = vmatmul.mubr.f32.gmra.mrb[0].mxu0 %v218
    %v394 = vpop.f32.mrb[0].mxu0
    %v395 = vadd.f32 0.0, %v394
    %v396 = vpop.f32.mrb[0].mxu0
    %397 = vmatprep.mubr.f32.mxu0 0.0
    %398 = vmatmul.mubr.f32.gmra.mrb[0].mxu0 %v223
    %v399 = vpop.f32.mrb[0].mxu0
    %v400 = vadd.f32 0.0, %v399
    %v401 = vpop.f32.mrb[0].mxu0
    %402 = vmatprep.mubr.f32.mxu0 0.0
    %403 = vmatmul.mubr.f32.gmra.mrb[0].mxu0 %v228
    %v404 = vpop.f32.mrb[0].mxu0
    %v405 = vadd.f32 0.0, %v404
    %v406 = vpop.f32.mrb[0].mxu0
    %407 = vmatprep.mubr.f32.mxu0 0.0
    %408 = vmatmul.mubr.f32.gmra.mrb[0].mxu0 %v233
    %v409 = vpop.f32.mrb[0].mxu0
    %v410 = vadd.f32 0.0, %v409
    %v411 = vpop.f32.mrb[0].mxu0
    %412 = vmatprep.mubr.f32.mxu0 0.0
    %413 = vmatmul.mubr.f32.gmra.mrb[0].mxu0 %v238
    %v414 = vpop.f32.mrb[0].mxu0
    %v415 = vadd.f32 0.0, %v414
    %v416 = vpop.f32.mrb[0].mxu0
    %417 = vmatprep.mubr.f32.mxu0 0.0
    %418 = vmatmul.mubr.f32.gmra.mrb[0].mxu0 %v243
    %v419 = vpop.f32.mrb[0].mxu0
    %v420 = vadd.f32 0.0, %v419
    %v421 = vpop.f32.mrb[0].mxu0
    %422 = vmatprep.mubr.f32.mxu0 0.0
    %423 = vmatmul.mubr.f32.gmra.mrb[0].mxu0 %v248
    %v424 = vpop.f32.mrb[0].mxu0
    %v425 = vadd.f32 0.0, %v424
    %v426 = vpop.f32.mrb[0].mxu0
    %427 = vmatprep.mubr.f32.mxu0 0.0
    %428 = vmatmul.mubr.f32.gmra.mrb[0].mxu0 %v253
    %v429 = vpop.f32.mrb[0].mxu0
    %v430 = vadd.f32 0.0, %v429
    %v431 = vpop.f32.mrb[0].mxu0
    %432 = vmatprep.mubr.f32.mxu0 0.0
    %433 = vmatmul.mubr.f32.gmra.mrb[0].mxu0 %v258
    %v434 = vpop.f32.mrb[0].mxu0
    %v435 = vadd.f32 0.0, %v434
    %v436 = vpop.f32.mrb[0].mxu0
    %437 = vmatprep.mubr.f32.mxu0 0.0
    %438 = vmatmul.mubr.f32.gmra.mrb[0].mxu0 %v263
    %v439 = vpop.f32.mrb[0].mxu0
    %v440 = vadd.f32 0.0, %v439
    %v441 = vpop.f32.mrb[0].mxu0
    %442 = vdwg.mxu0
    %v443 = vadd.f32 %v266, %v365
    %v444 = vadd.f32 %v267, %v370
    %v445 = vadd.f32 %v268, %v375
    %v446 = vadd.f32 %v269, %v380
    %v447 = vadd.f32 %v270, %v385
    %v448 = vadd.f32 %v271, %v390
    %v449 = vadd.f32 %v272, %v395
    %v450 = vadd.f32 %v273, %v400
    %v451 = vadd.f32 %v274, %v405
    %v452 = vadd.f32 %v275, %v410
    %v453 = vadd.f32 %v276, %v415
    %v454 = vadd.f32 %v277, %v420
    %v455 = vadd.f32 %v278, %v425
    %v456 = vadd.f32 %v279, %v430
    %v457 = vadd.f32 %v280, %v435
    %v458 = vadd.f32 %v281, %v440
    %459 = vst [vmem:[#allocation2] sm:$0xff] %v443
    %460 = vst [vmem:[#allocation2 + $0x8] sm:$0xff] %v444
    %461 = vst [vmem:[#allocation2 + $0x10] sm:$0xff] %v445
    %462 = vst [vmem:[#allocation2 + $0x18] sm:$0xff] %v446
    %463 = vst [vmem:[#allocation2 + $0x20] sm:$0xff] %v447
    %464 = vst [vmem:[#allocation2 + $0x28] sm:$0xff] %v448
    %465 = vst [vmem:[#allocation2 + $0x30] sm:$0xff] %v449
    %466 = vst [vmem:[#allocation2 + $0x38] sm:$0xff] %v450
    %467 = vst [vmem:[#allocation2 + $0x40] sm:$0xff] %v451
    %468 = vst [vmem:[#allocation2 + $0x48] sm:$0xff] %v452
    %469 = vst [vmem:[#allocation2 + $0x50] sm:$0xff] %v453
    %470 = vst [vmem:[#allocation2 + $0x58] sm:$0xff] %v454
    %471 = vst [vmem:[#allocation2 + $0x60] sm:$0xff] %v455
    %472 = vst [vmem:[#allocation2 + $0x68] sm:$0xff] %v456
    %473 = vst [vmem:[#allocation2 + $0x70] sm:$0xff] %v457
    %474 = vst [vmem:[#allocation2 + $0x78] sm:$0xff] %v458
    // Predicated region
    $region38: #{tpu_custom_call.1} parent=1 // pred_check
      %p475 = pneg %p62
    $region39: #{tpu_custom_call.1} parent=1 // pred_check_branch
      %477 = sbr.rel (%p475) target = $region41
    $region40: #{tpu_custom_call.1} parent=1 // pred_region
      %v478 = vld [vmem:[#allocation2] sm:$0xff]
      %v479 = vld [vmem:[#allocation2 + $0x8] sm:$0xff]
      %v480 = vld [vmem:[#allocation2 + $0x10] sm:$0xff]
      %v481 = vld [vmem:[#allocation2 + $0x18] sm:$0xff]
      %v482 = vld [vmem:[#allocation2 + $0x20] sm:$0xff]
      %v483 = vld [vmem:[#allocation2 + $0x28] sm:$0xff]
      %v484 = vld [vmem:[#allocation2 + $0x30] sm:$0xff]
      %v485 = vld [vmem:[#allocation2 + $0x38] sm:$0xff]
      %v486 = vld [vmem:[#allocation2 + $0x40] sm:$0xff]
      %v487 = vld [vmem:[#allocation2 + $0x48] sm:$0xff]
      %v488 = vld [vmem:[#allocation2 + $0x50] sm:$0xff]
      %v489 = vld [vmem:[#allocation2 + $0x58] sm:$0xff]
      %v490 = vld [vmem:[#allocation2 + $0x60] sm:$0xff]
      %v491 = vld [vmem:[#allocation2 + $0x68] sm:$0xff]
      %v492 = vld [vmem:[#allocation2 + $0x70] sm:$0xff]
      %v493 = vld [vmem:[#allocation2 + $0x78] sm:$0xff]
      %v494 = vld [vmem:[%s4] sm:$0x1]
      %v496 = vlaneseq
      %v497 = vshrl.u32 %v496, 7
      %v498 = vsub.s32 0, %v497
      %v499 = vrot.slane %v494, %v498
      %v501 = vadd.f32 %v478, %v499
      %v502 = vadd.f32 %v479, %v499
      %v503 = vadd.f32 %v480, %v499
      %v504 = vadd.f32 %v481, %v499
      %v505 = vadd.f32 %v482, %v499
      %v506 = vadd.f32 %v483, %v499
      %v507 = vadd.f32 %v484, %v499
      %v508 = vadd.f32 %v485, %v499
      %v509 = vadd.f32 %v486, %v499
      %v510 = vadd.f32 %v487, %v499
      %v511 = vadd.f32 %v488, %v499
      %v512 = vadd.f32 %v489, %v499
      %v513 = vadd.f32 %v490, %v499
      %v514 = vadd.f32 %v491, %v499
      %v515 = vadd.f32 %v492, %v499
      %v516 = vadd.f32 %v493, %v499
      %517 = vst [vmem:[#allocation9] sm:$0xff] %v501
      %518 = vst [vmem:[#allocation9 + $0x8] sm:$0xff] %v502
      %519 = vst [vmem:[#allocation9 + $0x10] sm:$0xff] %v503
      %520 = vst [vmem:[#allocation9 + $0x18] sm:$0xff] %v504
      %521 = vst [vmem:[#allocation9 + $0x20] sm:$0xff] %v505
      %522 = vst [vmem:[#allocation9 + $0x28] sm:$0xff] %v506
      %523 = vst [vmem:[#allocation9 + $0x30] sm:$0xff] %v507
      %524 = vst [vmem:[#allocation9 + $0x38] sm:$0xff] %v508
      %525 = vst [vmem:[#allocation9 + $0x40] sm:$0xff] %v509
      %526 = vst [vmem:[#allocation9 + $0x48] sm:$0xff] %v510
      %527 = vst [vmem:[#allocation9 + $0x50] sm:$0xff] %v511
      %528 = vst [vmem:[#allocation9 + $0x58] sm:$0xff] %v512
      %529 = vst [vmem:[#allocation9 + $0x60] sm:$0xff] %v513
      %530 = vst [vmem:[#allocation9 + $0x68] sm:$0xff] %v514
      %531 = vst [vmem:[#allocation9 + $0x70] sm:$0xff] %v515
      %532 = vst [vmem:[#allocation9 + $0x78] sm:$0xff] %v516
    $region41: #{tpu_custom_call.1} parent=1 // pred_fallthru
      _
    // Predicated region
    $region42: #{tpu_custom_call.1} parent=1 // pred_check
      _
    $region43: #{tpu_custom_call.1} parent=1 // pred_check_branch
      %534 = sbr.rel (0) target = $region45
    $region44: #{tpu_custom_call.1} parent=1 // pred_region
      %s536 = ssub.s32 2048, 2048
      %537 = vsyncadd [#allocation5], %s536
      %s538 = sshll.u32 [#allocation9], 4
      %s539 = int_to_ptr.vmem [resolvable:$true] %s538
      %544 = dma.vmem_to_hbm [thread:$0]  %s539, 2048, %s5, [#allocation5], 128, 128, 8
    $region45: #{tpu_custom_call.1} parent=1 // pred_fallthru
      _
    // Predicated region
    $region46: #{tpu_custom_call.1} parent=1 // pred_check
      _
    $region47: #{tpu_custom_call.1} parent=1 // pred_check_branch
      %546 = sbr.rel (0) target = $region49
    $region48: #{tpu_custom_call.1} parent=1 // pred_region
      %547 = dma.done [#allocation5], 2048
    $region49: #{tpu_custom_call.1} parent=1 // pred_fallthru
      _
    %548 = vsyncpa [#allocation4], 1
    %549 = vsyncpa [#allocation7], 1
    %550 = vsyncpa [#allocation5], 1

</llo_original>
